<compile_context>
chip_gen: v7x
topology: tpu7x:2x2x1
jax: 0.10.0
libtpu: 0.0.40
codegen_flags: <defaults>
</compile_context>

<pallas_src>
import jax
import jax.numpy as jnp
from jax import lax
from jax.experimental import pallas as pl
from jax.experimental.pallas import tpu as pltpu

HIDDEN = 768
OUT = 2


def qa_kernel(x_ref, w_ref, b_ref, o_ref):
    # x_ref: (tm, 768), w_ref: (768, 2), b_ref: (2, 1), o_ref: (2, tm)  [lane-dense]
    acc = lax.dot_general(
        w_ref[...], x_ref[...],
        dimension_numbers=(((0,), (1,)), ((), ())),   # contract H: (768,2)x(tm,768) -> (2,tm)
        preferred_element_type=jnp.float32,
    )
    o_ref[...] = (acc + b_ref[...]).astype(o_ref.dtype)


def mrc_dense_forward(sequence_out, weight, bias, *, tm=1024):
    """sequence_out: [B, S, 768]
       weight:       [768, 2]   (already transposed from torch's [2, 768])
       bias:         [2]
       returns (start_logits [B, S], end_logits [B, S])"""
    B, S, H = sequence_out.shape
    assert H == HIDDEN
    N = B * S
    x = sequence_out.reshape(N, H)

    # Keep the tile a multiple of 128 (lane-dense output block) — also covers the
    # f32 sublane (8) requirement for the x block.
    tm = max(128, (tm // 128) * 128)
    # Don't allocate a huge tile for tiny inputs: shrink to the 128-rounded row count.
    tm_eff = min(tm, pl.cdiv(N, 128) * 128)
    n_pad = pl.cdiv(N, tm_eff) * tm_eff
    if n_pad != N:
        x = jnp.pad(x, ((0, n_pad - N), (0, 0)))

    b2d = bias.reshape(OUT, 1).astype(jnp.float32)
    out_dtype = sequence_out.dtype

    cost = pl.CostEstimate(
        flops=2 * n_pad * HIDDEN * OUT,
        bytes_accessed=(n_pad * HIDDEN + n_pad * OUT + HIDDEN * OUT) * x.dtype.itemsize,
        transcendentals=0,
    )

    logits = pl.pallas_call(
        qa_kernel,
        out_shape=jax.ShapeDtypeStruct((OUT, n_pad), out_dtype),
        grid_spec=pltpu.PrefetchScalarGridSpec(
            num_scalar_prefetch=0,
            grid=(n_pad // tm_eff,),
            in_specs=[
                pl.BlockSpec((tm_eff, H), lambda i: (i, 0)),
                pl.BlockSpec((H, OUT), lambda i: (0, 0)),
                pl.BlockSpec((OUT, 1), lambda i: (0, 0)),
            ],
            out_specs=pl.BlockSpec((OUT, tm_eff), lambda i: (0, i)),
        ),
        compiler_params=pltpu.CompilerParams(
            dimension_semantics=("parallel",),
            vmem_limit_bytes=32 * 1024 * 1024,
        ),
        cost_estimate=cost,
    )(x, weight, b2d)

    # Contiguous row slices (no stride-2 gather), then drop padding and reshape.
    start_logits = logits[0, :N].reshape(B, S)
    end_logits = logits[1, :N].reshape(B, S)
    return start_logits, end_logits


if __name__ == "__main__":
    key = jax.random.PRNGKey(0)
    k_x, k_w, k_b = jax.random.split(key, 3)

    B, S = 2, 8
    sequence_out = jax.random.normal(k_x, (B, S, HIDDEN), dtype=jnp.float32)

    # Deterministic init mirroring nn.Linear default (uniform in +/- 1/sqrt(fan_in)).
    bound = 1.0 / (HIDDEN ** 0.5)
    weight = jax.random.uniform(k_w, (HIDDEN, OUT), minval=-bound, maxval=bound,
                                dtype=jnp.float32)
    bias = jax.random.uniform(k_b, (OUT,), minval=-bound, maxval=bound,
                              dtype=jnp.float32)

    start_logits, end_logits = mrc_dense_forward(sequence_out, weight, bias)
    jax.block_until_ready((start_logits, end_logits))

    # Sanity check against plain JAX reference.
    ref = sequence_out @ weight + bias
    ref_start, ref_end = ref[..., 0], ref[..., 1]
    assert start_logits.shape == (B, S) and end_logits.shape == (B, S)
    assert jnp.allclose(start_logits, ref_start, atol=1e-4)
    assert jnp.allclose(end_logits, ref_end, atol=1e-4)

    print("KERNEL_OK")
</pallas_src>

<mosaic_0001>
module attributes {stable_mosaic.version = 11 : i64} {
  func.func @qa_kernel(%arg0: i32, %arg1: memref<128x768xf32, #tpu.memory_space<vmem>>, %arg2: memref<768x2xf32, #tpu.memory_space<vmem>>, %arg3: memref<2x1xf32, #tpu.memory_space<vmem>>, %arg4: memref<2x128xf32, #tpu.memory_space<vmem>>) attributes {dimension_semantics = [#tpu.dimension_semantics<parallel>], iteration_bounds = array<i64: 1>, scalar_prefetch = 0 : i64, scratch_operands = 0 : i64, tpu.core_type = #tpu.core_type<tc>, window_params = [{transform_indices = @transform_0, window_bounds = array<i64: 128, 768>}, {pipeline_mode = #tpu.pipeline_mode<synchronous>, transform_indices = @transform_1, window_bounds = array<i64: 768, 2>}, {pipeline_mode = #tpu.pipeline_mode<synchronous>, transform_indices = @transform_2, window_bounds = array<i64: 2, 1>}, {transform_indices = @transform_3, window_bounds = array<i64: 2, 128>}]} {
    %c0 = arith.constant 0 : index
    %c0_0 = arith.constant 0 : index
    %0 = vector.load %arg2[%c0, %c0_0] : memref<768x2xf32, #tpu.memory_space<vmem>>, vector<768x2xf32>
    %c0_1 = arith.constant 0 : index
    %c0_2 = arith.constant 0 : index
    %1 = vector.load %arg1[%c0_1, %c0_2] : memref<128x768xf32, #tpu.memory_space<vmem>>, vector<128x768xf32>
    %cst = arith.constant dense<0.000000e+00> : vector<2x128xf32>
    %2 = tpu.matmul %0, %1, %cst {dimension_numbers = #tpu.dot_dimension_numbers<[0], [1], [1], [0], [0, 1, 1, 0], [], []>} : vector<768x2xf32>, vector<128x768xf32>, vector<2x128xf32> -> vector<2x128xf32>
    %c0_3 = arith.constant 0 : index
    %c0_4 = arith.constant 0 : index
    %3 = vector.load %arg3[%c0_3, %c0_4] : memref<2x1xf32, #tpu.memory_space<vmem>>, vector<2x1xf32>
    %4 = vector.broadcast %3 : vector<2x1xf32> to vector<2x128xf32>
    %5 = arith.addf %2, %4 : vector<2x128xf32>
    %c0_5 = arith.constant 0 : index
    %c0_6 = arith.constant 0 : index
    %6 = vector.load %arg4[%c0_5, %c0_6] : memref<2x128xf32, #tpu.memory_space<vmem>>, vector<2x128xf32>
    tpu.vector_store %arg4[%c0_5, %c0_6], %5 {strides = array<i32>} : memref<2x128xf32, #tpu.memory_space<vmem>>, vector<2x128xf32>,
    return
  }
  func.func @transform_0(%arg0: i32) -> (i32, i32) {
    %c0_i32 = arith.constant 0 : i32
    %c0_i32_0 = arith.constant 0 : i32
    return %arg0, %c0_i32 : i32, i32
  }
  func.func @transform_1(%arg0: i32) -> (i32, i32) {
    %c0_i32 = arith.constant 0 : i32
    %c0_i32_0 = arith.constant 0 : i32
    %c0_i32_1 = arith.constant 0 : i32
    return %c0_i32, %c0_i32_0 : i32, i32
  }
  func.func @transform_2(%arg0: i32) -> (i32, i32) {
    %c0_i32 = arith.constant 0 : i32
    %c0_i32_0 = arith.constant 0 : i32
    %c0_i32_1 = arith.constant 0 : i32
    return %c0_i32, %c0_i32_0 : i32, i32
  }
  func.func @transform_3(%arg0: i32) -> (i32, i32) {
    %c0_i32 = arith.constant 0 : i32
    %c0_i32_0 = arith.constant 0 : i32
    return %c0_i32, %arg0 : i32, i32
  }
}

</mosaic_0001>

<llo_original>
// kernel: tpu_custom_call.1
$region0: #{tpu_custom_call.1}
  #allocation0 [shape = 'u32[]', space=smem, size = 0x4, offset = 0x4, fixed_abs, tag = 'smem constant byte address 0x4 - core index']
  #allocation1 [shape = 'u32[144,128]{1,0:T(1,128)}', space=vmem, size = 0x12000, scoped, tag = 'internal scratch']
  %s0 = inlined_call_operand.vmem [shape: f32[128,768], index: 0, kind: input, shape index: {}]
  %s1 = inlined_call_operand.vmem [shape: f32[768,2], index: 1, kind: input, shape index: {}]
  %s2 = inlined_call_operand.vmem [shape: f32[2,1], index: 2, kind: input, shape index: {}]
  %s3 = inlined_call_operand.hbm [shape: f32[2,128], index: 3, kind: output, shape index: {}]
  %s4 = sld [smem:[#allocation0]]
  $region22: #{tpu_custom_call.1} parent=0
    _
  %s6 = ssub.s32 1, %s4
  %s7 = scalar_select 0, %s6, %s4
  $region1: #{tpu_custom_call.1} parent=0
    #allocation2 [shape = 'u8[1024]{0}', space=vmem, size = 0x400, scoped, tag = 'output window, operand 0, single buffered']
    #allocation3 [shape = 's32[1]{0}', space=sflag, size = 0x4, scoped, tag = 'scoped memory for tpu_custom_call.1']
    %8 = vsyncpa [#allocation3], 0
    // Predicated region
    $region2: #{tpu_custom_call.1} parent=1 // pred_check
      _
    $region3: #{tpu_custom_call.1} parent=1 // pred_check_branch
      %10 = sbr.rel (0) target = $region5
    $region4: #{tpu_custom_call.1} parent=1 // pred_region
      _
    $region5: #{tpu_custom_call.1} parent=1 // pred_fallthru
      _
    // Predicated region
    $region6: #{tpu_custom_call.1} parent=1 // pred_check
      _
    $region7: #{tpu_custom_call.1} parent=1 // pred_check_branch
      %12 = sbr.rel (0) target = $region9
    $region8: #{tpu_custom_call.1} parent=1 // pred_region
      _
    $region9: #{tpu_custom_call.1} parent=1 // pred_fallthru
      _
    // Predicated region
    $region10: #{tpu_custom_call.1} parent=1 // pred_check
      _
    $region11: #{tpu_custom_call.1} parent=1 // pred_check_branch
      %14 = sbr.rel (0) target = $region13
    $region12: #{tpu_custom_call.1} parent=1 // pred_region
      _
    $region13: #{tpu_custom_call.1} parent=1 // pred_fallthru
      _
    %v15 = vld [vmem:[%s1] sm:$0xff]
    %v16 = vld [vmem:[%s1 + $0x8] sm:$0xff]
    %v17 = vld [vmem:[%s1 + $0x10] sm:$0xff]
    %v18 = vld [vmem:[%s1 + $0x18] sm:$0xff]
    %v19 = vld [vmem:[%s1 + $0x20] sm:$0xff]
    %v20 = vld [vmem:[%s1 + $0x28] sm:$0xff]
    %v21 = vld [vmem:[%s1 + $0x30] sm:$0xff]
    %v22 = vld [vmem:[%s1 + $0x38] sm:$0xff]
    %v23 = vld [vmem:[%s1 + $0x40] sm:$0xff]
    %v24 = vld [vmem:[%s1 + $0x48] sm:$0xff]
    %v25 = vld [vmem:[%s1 + $0x50] sm:$0xff]
    %v26 = vld [vmem:[%s1 + $0x58] sm:$0xff]
    %v27 = vld [vmem:[%s1 + $0x60] sm:$0xff]
    %v28 = vld [vmem:[%s1 + $0x68] sm:$0xff]
    %v29 = vld [vmem:[%s1 + $0x70] sm:$0xff]
    %v30 = vld [vmem:[%s1 + $0x78] sm:$0xff]
    %v31 = vld [vmem:[%s1 + $0x80] sm:$0xff]
    %v32 = vld [vmem:[%s1 + $0x88] sm:$0xff]
    %v33 = vld [vmem:[%s1 + $0x90] sm:$0xff]
    %v34 = vld [vmem:[%s1 + $0x98] sm:$0xff]
    %v35 = vld [vmem:[%s1 + $0xa0] sm:$0xff]
    %v36 = vld [vmem:[%s1 + $0xa8] sm:$0xff]
    %v37 = vld [vmem:[%s1 + $0xb0] sm:$0xff]
    %v38 = vld [vmem:[%s1 + $0xb8] sm:$0xff]
    %v39 = vld [vmem:[%s1 + $0xc0] sm:$0xff]
    %v40 = vld [vmem:[%s1 + $0xc8] sm:$0xff]
    %v41 = vld [vmem:[%s1 + $0xd0] sm:$0xff]
    %v42 = vld [vmem:[%s1 + $0xd8] sm:$0xff]
    %v43 = vld [vmem:[%s1 + $0xe0] sm:$0xff]
    %v44 = vld [vmem:[%s1 + $0xe8] sm:$0xff]
    %v45 = vld [vmem:[%s1 + $0xf0] sm:$0xff]
    %v46 = vld [vmem:[%s1 + $0xf8] sm:$0xff]
    %v47 = vld [vmem:[%s1 + $0x100] sm:$0xff]
    %v48 = vld [vmem:[%s1 + $0x108] sm:$0xff]
    %v49 = vld [vmem:[%s1 + $0x110] sm:$0xff]
    %v50 = vld [vmem:[%s1 + $0x118] sm:$0xff]
    %v51 = vld [vmem:[%s1 + $0x120] sm:$0xff]
    %v52 = vld [vmem:[%s1 + $0x128] sm:$0xff]
    %v53 = vld [vmem:[%s1 + $0x130] sm:$0xff]
    %v54 = vld [vmem:[%s1 + $0x138] sm:$0xff]
    %v55 = vld [vmem:[%s1 + $0x140] sm:$0xff]
    %v56 = vld [vmem:[%s1 + $0x148] sm:$0xff]
    %v57 = vld [vmem:[%s1 + $0x150] sm:$0xff]
    %v58 = vld [vmem:[%s1 + $0x158] sm:$0xff]
    %v59 = vld [vmem:[%s1 + $0x160] sm:$0xff]
    %v60 = vld [vmem:[%s1 + $0x168] sm:$0xff]
    %v61 = vld [vmem:[%s1 + $0x170] sm:$0xff]
    %v62 = vld [vmem:[%s1 + $0x178] sm:$0xff]
    %v63 = vld [vmem:[%s1 + $0x180] sm:$0xff]
    %v64 = vld [vmem:[%s1 + $0x188] sm:$0xff]
    %v65 = vld [vmem:[%s1 + $0x190] sm:$0xff]
    %v66 = vld [vmem:[%s1 + $0x198] sm:$0xff]
    %v67 = vld [vmem:[%s1 + $0x1a0] sm:$0xff]
    %v68 = vld [vmem:[%s1 + $0x1a8] sm:$0xff]
    %v69 = vld [vmem:[%s1 + $0x1b0] sm:$0xff]
    %v70 = vld [vmem:[%s1 + $0x1b8] sm:$0xff]
    %v71 = vld [vmem:[%s1 + $0x1c0] sm:$0xff]
    %v72 = vld [vmem:[%s1 + $0x1c8] sm:$0xff]
    %v73 = vld [vmem:[%s1 + $0x1d0] sm:$0xff]
    %v74 = vld [vmem:[%s1 + $0x1d8] sm:$0xff]
    %v75 = vld [vmem:[%s1 + $0x1e0] sm:$0xff]
    %v76 = vld [vmem:[%s1 + $0x1e8] sm:$0xff]
    %v77 = vld [vmem:[%s1 + $0x1f0] sm:$0xff]
    %v78 = vld [vmem:[%s1 + $0x1f8] sm:$0xff]
    %v79 = vld [vmem:[%s1 + $0x200] sm:$0xff]
    %v80 = vld [vmem:[%s1 + $0x208] sm:$0xff]
    %v81 = vld [vmem:[%s1 + $0x210] sm:$0xff]
    %v82 = vld [vmem:[%s1 + $0x218] sm:$0xff]
    %v83 = vld [vmem:[%s1 + $0x220] sm:$0xff]
    %v84 = vld [vmem:[%s1 + $0x228] sm:$0xff]
    %v85 = vld [vmem:[%s1 + $0x230] sm:$0xff]
    %v86 = vld [vmem:[%s1 + $0x238] sm:$0xff]
    %v87 = vld [vmem:[%s1 + $0x240] sm:$0xff]
    %v88 = vld [vmem:[%s1 + $0x248] sm:$0xff]
    %v89 = vld [vmem:[%s1 + $0x250] sm:$0xff]
    %v90 = vld [vmem:[%s1 + $0x258] sm:$0xff]
    %v91 = vld [vmem:[%s1 + $0x260] sm:$0xff]
    %v92 = vld [vmem:[%s1 + $0x268] sm:$0xff]
    %v93 = vld [vmem:[%s1 + $0x270] sm:$0xff]
    %v94 = vld [vmem:[%s1 + $0x278] sm:$0xff]
    %v95 = vld [vmem:[%s1 + $0x280] sm:$0xff]
    %v96 = vld [vmem:[%s1 + $0x288] sm:$0xff]
    %v97 = vld [vmem:[%s1 + $0x290] sm:$0xff]
    %v98 = vld [vmem:[%s1 + $0x298] sm:$0xff]
    %v99 = vld [vmem:[%s1 + $0x2a0] sm:$0xff]
    %v100 = vld [vmem:[%s1 + $0x2a8] sm:$0xff]
    %v101 = vld [vmem:[%s1 + $0x2b0] sm:$0xff]
    %v102 = vld [vmem:[%s1 + $0x2b8] sm:$0xff]
    %v103 = vld [vmem:[%s1 + $0x2c0] sm:$0xff]
    %v104 = vld [vmem:[%s1 + $0x2c8] sm:$0xff]
    %v105 = vld [vmem:[%s1 + $0x2d0] sm:$0xff]
    %v106 = vld [vmem:[%s1 + $0x2d8] sm:$0xff]
    %v107 = vld [vmem:[%s1 + $0x2e0] sm:$0xff]
    %v108 = vld [vmem:[%s1 + $0x2e8] sm:$0xff]
    %v109 = vld [vmem:[%s1 + $0x2f0] sm:$0xff]
    %v110 = vld [vmem:[%s1 + $0x2f8] sm:$0xff]
    %v111 = vld [vmem:[%s0] sm:$0xff]
    %v112 = vld [vmem:[%s0 + $0x8] sm:$0xff]
    %v113 = vld [vmem:[%s0 + $0x10] sm:$0xff]
    %v114 = vld [vmem:[%s0 + $0x18] sm:$0xff]
    %v115 = vld [vmem:[%s0 + $0x20] sm:$0xff]
    %v116 = vld [vmem:[%s0 + $0x28] sm:$0xff]
    %v117 = vld [vmem:[%s0 + $0x30] sm:$0xff]
    %v118 = vld [vmem:[%s0 + $0x38] sm:$0xff]
    %v119 = vld [vmem:[%s0 + $0x40] sm:$0xff]
    %v120 = vld [vmem:[%s0 + $0x48] sm:$0xff]
    %v121 = vld [vmem:[%s0 + $0x50] sm:$0xff]
    %v122 = vld [vmem:[%s0 + $0x58] sm:$0xff]
    %v123 = vld [vmem:[%s0 + $0x60] sm:$0xff]
    %v124 = vld [vmem:[%s0 + $0x68] sm:$0xff]
    %v125 = vld [vmem:[%s0 + $0x70] sm:$0xff]
    %v126 = vld [vmem:[%s0 + $0x78] sm:$0xff]
    %v127 = vld [vmem:[%s0 + $0x80] sm:$0xff]
    %v128 = vld [vmem:[%s0 + $0x88] sm:$0xff]
    %v129 = vld [vmem:[%s0 + $0x90] sm:$0xff]
    %v130 = vld [vmem:[%s0 + $0x98] sm:$0xff]
    %v131 = vld [vmem:[%s0 + $0xa0] sm:$0xff]
    %v132 = vld [vmem:[%s0 + $0xa8] sm:$0xff]
    %v133 = vld [vmem:[%s0 + $0xb0] sm:$0xff]
    %v134 = vld [vmem:[%s0 + $0xb8] sm:$0xff]
    %v135 = vld [vmem:[%s0 + $0xc0] sm:$0xff]
    %v136 = vld [vmem:[%s0 + $0xc8] sm:$0xff]
    %v137 = vld [vmem:[%s0 + $0xd0] sm:$0xff]
    %v138 = vld [vmem:[%s0 + $0xd8] sm:$0xff]
    %v139 = vld [vmem:[%s0 + $0xe0] sm:$0xff]
    %v140 = vld [vmem:[%s0 + $0xe8] sm:$0xff]
    %v141 = vld [vmem:[%s0 + $0xf0] sm:$0xff]
    %v142 = vld [vmem:[%s0 + $0xf8] sm:$0xff]
    %v143 = vld [vmem:[%s0 + $0x100] sm:$0xff]
    %v144 = vld [vmem:[%s0 + $0x108] sm:$0xff]
    %v145 = vld [vmem:[%s0 + $0x110] sm:$0xff]
    %v146 = vld [vmem:[%s0 + $0x118] sm:$0xff]
    %v147 = vld [vmem:[%s0 + $0x120] sm:$0xff]
    %v148 = vld [vmem:[%s0 + $0x128] sm:$0xff]
    %v149 = vld [vmem:[%s0 + $0x130] sm:$0xff]
    %v150 = vld [vmem:[%s0 + $0x138] sm:$0xff]
    %v151 = vld [vmem:[%s0 + $0x140] sm:$0xff]
    %v152 = vld [vmem:[%s0 + $0x148] sm:$0xff]
    %v153 = vld [vmem:[%s0 + $0x150] sm:$0xff]
    %v154 = vld [vmem:[%s0 + $0x158] sm:$0xff]
    %v155 = vld [vmem:[%s0 + $0x160] sm:$0xff]
    %v156 = vld [vmem:[%s0 + $0x168] sm:$0xff]
    %v157 = vld [vmem:[%s0 + $0x170] sm:$0xff]
    %v158 = vld [vmem:[%s0 + $0x178] sm:$0xff]
    %v159 = vld [vmem:[%s0 + $0x180] sm:$0xff]
    %v160 = vld [vmem:[%s0 + $0x188] sm:$0xff]
    %v161 = vld [vmem:[%s0 + $0x190] sm:$0xff]
    %v162 = vld [vmem:[%s0 + $0x198] sm:$0xff]
    %v163 = vld [vmem:[%s0 + $0x1a0] sm:$0xff]
    %v164 = vld [vmem:[%s0 + $0x1a8] sm:$0xff]
    %v165 = vld [vmem:[%s0 + $0x1b0] sm:$0xff]
    %v166 = vld [vmem:[%s0 + $0x1b8] sm:$0xff]
    %v167 = vld [vmem:[%s0 + $0x1c0] sm:$0xff]
    %v168 = vld [vmem:[%s0 + $0x1c8] sm:$0xff]
    %v169 = vld [vmem:[%s0 + $0x1d0] sm:$0xff]
    %v170 = vld [vmem:[%s0 + $0x1d8] sm:$0xff]
    %v171 = vld [vmem:[%s0 + $0x1e0] sm:$0xff]
    %v172 = vld [vmem:[%s0 + $0x1e8] sm:$0xff]
    %v173 = vld [vmem:[%s0 + $0x1f0] sm:$0xff]
    %v174 = vld [vmem:[%s0 + $0x1f8] sm:$0xff]
    %v175 = vld [vmem:[%s0 + $0x200] sm:$0xff]
    %v176 = vld [vmem:[%s0 + $0x208] sm:$0xff]
    %v177 = vld [vmem:[%s0 + $0x210] sm:$0xff]
    %v178 = vld [vmem:[%s0 + $0x218] sm:$0xff]
    %v179 = vld [vmem:[%s0 + $0x220] sm:$0xff]
    %v180 = vld [vmem:[%s0 + $0x228] sm:$0xff]
    %v181 = vld [vmem:[%s0 + $0x230] sm:$0xff]
    %v182 = vld [vmem:[%s0 + $0x238] sm:$0xff]
    %v183 = vld [vmem:[%s0 + $0x240] sm:$0xff]
    %v184 = vld [vmem:[%s0 + $0x248] sm:$0xff]
    %v185 = vld [vmem:[%s0 + $0x250] sm:$0xff]
    %v186 = vld [vmem:[%s0 + $0x258] sm:$0xff]
    %v187 = vld [vmem:[%s0 + $0x260] sm:$0xff]
    %v188 = vld [vmem:[%s0 + $0x268] sm:$0xff]
    %v189 = vld [vmem:[%s0 + $0x270] sm:$0xff]
    %v190 = vld [vmem:[%s0 + $0x278] sm:$0xff]
    %v191 = vld [vmem:[%s0 + $0x280] sm:$0xff]
    %v192 = vld [vmem:[%s0 + $0x288] sm:$0xff]
    %v193 = vld [vmem:[%s0 + $0x290] sm:$0xff]
    %v194 = vld [vmem:[%s0 + $0x298] sm:$0xff]
    %v195 = vld [vmem:[%s0 + $0x2a0] sm:$0xff]
    %v196 = vld [vmem:[%s0 + $0x2a8] sm:$0xff]
    %v197 = vld [vmem:[%s0 + $0x2b0] sm:$0xff]
    %v198 = vld [vmem:[%s0 + $0x2b8] sm:$0xff]
    %v199 = vld [vmem:[%s0 + $0x2c0] sm:$0xff]
    %v200 = vld [vmem:[%s0 + $0x2c8] sm:$0xff]
    %v201 = vld [vmem:[%s0 + $0x2d0] sm:$0xff]
    %v202 = vld [vmem:[%s0 + $0x2d8] sm:$0xff]
    %v203 = vld [vmem:[%s0 + $0x2e0] sm:$0xff]
    %v204 = vld [vmem:[%s0 + $0x2e8] sm:$0xff]
    %v205 = vld [vmem:[%s0 + $0x2f0] sm:$0xff]
    %v206 = vld [vmem:[%s0 + $0x2f8] sm:$0xff]
    %v207 = vld [vmem:[%s2] sm:$0x3]
    %209 = vset.pattern.permute.xlu0 0
    %210 = vperm.xlu0 %209, %v207
    %v211 = vpop.permute.xlu0 %210
    %213 = vxpose.xlu0.b32.start [1/16] %v15, 128
    %214 = vxpose.xlu0.b32.cont [2/16] %v16, 128
    %215 = vxpose.xlu0.b32.cont [3/16] %v17, 128
    %216 = vxpose.xlu0.b32.cont [4/16] %v18, 128
    %217 = vxpose.xlu0.b32.cont [5/16] %v19, 128
    %218 = vxpose.xlu0.b32.cont [6/16] %v20, 128
    %219 = vxpose.xlu0.b32.cont [7/16] %v21, 128
    %220 = vxpose.xlu0.b32.cont [8/16] %v22, 128
    %221 = vxpose.xlu0.b32.cont [9/16] %v23, 128
    %222 = vxpose.xlu0.b32.cont [10/16] %v24, 128
    %223 = vxpose.xlu0.b32.cont [11/16] %v25, 128
    %224 = vxpose.xlu0.b32.cont [12/16] %v26, 128
    %225 = vxpose.xlu0.b32.cont [13/16] %v27, 128
    %226 = vxpose.xlu0.b32.cont [14/16] %v28, 128
    %227 = vxpose.xlu0.b32.cont [15/16] %v29, 128
    %228 = vxpose.xlu0.b32.end [16/16] %v30, 128
    %v229 = vpop.trf.xlu0
    %v230 = vpop.trf.xlu0
    %v231 = vpop.trf.xlu0
    %v232 = vpop.trf.xlu0
    %v233 = vpop.trf.xlu0
    %v234 = vpop.trf.xlu0
    %v235 = vpop.trf.xlu0
    %v236 = vpop.trf.xlu0
    %v237 = vpop.trf.xlu0
    %v238 = vpop.trf.xlu0
    %v239 = vpop.trf.xlu0
    %v240 = vpop.trf.xlu0
    %v241 = vpop.trf.xlu0
    %v242 = vpop.trf.xlu0
    %v243 = vpop.trf.xlu0
    %v244 = vpop.trf.xlu0
    %245 = vxpose.xlu0.b32.start [1/16] %v31, 128
    %246 = vxpose.xlu0.b32.cont [2/16] %v32, 128
    %247 = vxpose.xlu0.b32.cont [3/16] %v33, 128
    %248 = vxpose.xlu0.b32.cont [4/16] %v34, 128
    %249 = vxpose.xlu0.b32.cont [5/16] %v35, 128
    %250 = vxpose.xlu0.b32.cont [6/16] %v36, 128
    %251 = vxpose.xlu0.b32.cont [7/16] %v37, 128
    %252 = vxpose.xlu0.b32.cont [8/16] %v38, 128
    %253 = vxpose.xlu0.b32.cont [9/16] %v39, 128
    %254 = vxpose.xlu0.b32.cont [10/16] %v40, 128
    %255 = vxpose.xlu0.b32.cont [11/16] %v41, 128
    %256 = vxpose.xlu0.b32.cont [12/16] %v42, 128
    %257 = vxpose.xlu0.b32.cont [13/16] %v43, 128
    %258 = vxpose.xlu0.b32.cont [14/16] %v44, 128
    %259 = vxpose.xlu0.b32.cont [15/16] %v45, 128
    %260 = vxpose.xlu0.b32.end [16/16] %v46, 128
    %v261 = vpop.trf.xlu0
    %v262 = vpop.trf.xlu0
    %v263 = vpop.trf.xlu0
    %v264 = vpop.trf.xlu0
    %v265 = vpop.trf.xlu0
    %v266 = vpop.trf.xlu0
    %v267 = vpop.trf.xlu0
    %v268 = vpop.trf.xlu0
    %v269 = vpop.trf.xlu0
    %v270 = vpop.trf.xlu0
    %v271 = vpop.trf.xlu0
    %v272 = vpop.trf.xlu0
    %v273 = vpop.trf.xlu0
    %v274 = vpop.trf.xlu0
    %v275 = vpop.trf.xlu0
    %v276 = vpop.trf.xlu0
    %277 = vxpose.xlu0.b32.start [1/16] %v47, 128
    %278 = vxpose.xlu0.b32.cont [2/16] %v48, 128
    %279 = vxpose.xlu0.b32.cont [3/16] %v49, 128
    %280 = vxpose.xlu0.b32.cont [4/16] %v50, 128
    %281 = vxpose.xlu0.b32.cont [5/16] %v51, 128
    %282 = vxpose.xlu0.b32.cont [6/16] %v52, 128
    %283 = vxpose.xlu0.b32.cont [7/16] %v53, 128
    %284 = vxpose.xlu0.b32.cont [8/16] %v54, 128
    %285 = vxpose.xlu0.b32.cont [9/16] %v55, 128
    %286 = vxpose.xlu0.b32.cont [10/16] %v56, 128
    %287 = vxpose.xlu0.b32.cont [11/16] %v57, 128
    %288 = vxpose.xlu0.b32.cont [12/16] %v58, 128
    %289 = vxpose.xlu0.b32.cont [13/16] %v59, 128
    %290 = vxpose.xlu0.b32.cont [14/16] %v60, 128
    %291 = vxpose.xlu0.b32.cont [15/16] %v61, 128
    %292 = vxpose.xlu0.b32.end [16/16] %v62, 128
    %v293 = vpop.trf.xlu0
    %v294 = vpop.trf.xlu0
    %v295 = vpop.trf.xlu0
    %v296 = vpop.trf.xlu0
    %v297 = vpop.trf.xlu0
    %v298 = vpop.trf.xlu0
    %v299 = vpop.trf.xlu0
    %v300 = vpop.trf.xlu0
    %v301 = vpop.trf.xlu0
    %v302 = vpop.trf.xlu0
    %v303 = vpop.trf.xlu0
    %v304 = vpop.trf.xlu0
    %v305 = vpop.trf.xlu0
    %v306 = vpop.trf.xlu0
    %v307 = vpop.trf.xlu0
    %v308 = vpop.trf.xlu0
    %309 = vxpose.xlu0.b32.start [1/16] %v63, 128
    %310 = vxpose.xlu0.b32.cont [2/16] %v64, 128
    %311 = vxpose.xlu0.b32.cont [3/16] %v65, 128
    %312 = vxpose.xlu0.b32.cont [4/16] %v66, 128
    %313 = vxpose.xlu0.b32.cont [5/16] %v67, 128
    %314 = vxpose.xlu0.b32.cont [6/16] %v68, 128
    %315 = vxpose.xlu0.b32.cont [7/16] %v69, 128
    %316 = vxpose.xlu0.b32.cont [8/16] %v70, 128
    %317 = vxpose.xlu0.b32.cont [9/16] %v71, 128
    %318 = vxpose.xlu0.b32.cont [10/16] %v72, 128
    %319 = vxpose.xlu0.b32.cont [11/16] %v73, 128
    %320 = vxpose.xlu0.b32.cont [12/16] %v74, 128
    %321 = vxpose.xlu0.b32.cont [13/16] %v75, 128
    %322 = vxpose.xlu0.b32.cont [14/16] %v76, 128
    %323 = vxpose.xlu0.b32.cont [15/16] %v77, 128
    %324 = vxpose.xlu0.b32.end [16/16] %v78, 128
    %v325 = vpop.trf.xlu0
    %v326 = vpop.trf.xlu0
    %v327 = vpop.trf.xlu0
    %v328 = vpop.trf.xlu0
    %v329 = vpop.trf.xlu0
    %v330 = vpop.trf.xlu0
    %v331 = vpop.trf.xlu0
    %v332 = vpop.trf.xlu0
    %v333 = vpop.trf.xlu0
    %v334 = vpop.trf.xlu0
    %v335 = vpop.trf.xlu0
    %v336 = vpop.trf.xlu0
    %v337 = vpop.trf.xlu0
    %v338 = vpop.trf.xlu0
    %v339 = vpop.trf.xlu0
    %v340 = vpop.trf.xlu0
    %341 = vxpose.xlu0.b32.start [1/16] %v79, 128
    %342 = vxpose.xlu0.b32.cont [2/16] %v80, 128
    %343 = vxpose.xlu0.b32.cont [3/16] %v81, 128
    %344 = vxpose.xlu0.b32.cont [4/16] %v82, 128
    %345 = vxpose.xlu0.b32.cont [5/16] %v83, 128
    %346 = vxpose.xlu0.b32.cont [6/16] %v84, 128
    %347 = vxpose.xlu0.b32.cont [7/16] %v85, 128
    %348 = vxpose.xlu0.b32.cont [8/16] %v86, 128
    %349 = vxpose.xlu0.b32.cont [9/16] %v87, 128
    %350 = vxpose.xlu0.b32.cont [10/16] %v88, 128
    %351 = vxpose.xlu0.b32.cont [11/16] %v89, 128
    %352 = vxpose.xlu0.b32.cont [12/16] %v90, 128
    %353 = vxpose.xlu0.b32.cont [13/16] %v91, 128
    %354 = vxpose.xlu0.b32.cont [14/16] %v92, 128
    %355 = vxpose.xlu0.b32.cont [15/16] %v93, 128
    %356 = vxpose.xlu0.b32.end [16/16] %v94, 128
    %v357 = vpop.trf.xlu0
    %v358 = vpop.trf.xlu0
    %v359 = vpop.trf.xlu0
    %v360 = vpop.trf.xlu0
    %v361 = vpop.trf.xlu0
    %v362 = vpop.trf.xlu0
    %v363 = vpop.trf.xlu0
    %v364 = vpop.trf.xlu0
    %v365 = vpop.trf.xlu0
    %v366 = vpop.trf.xlu0
    %v367 = vpop.trf.xlu0
    %v368 = vpop.trf.xlu0
    %v369 = vpop.trf.xlu0
    %v370 = vpop.trf.xlu0
    %v371 = vpop.trf.xlu0
    %v372 = vpop.trf.xlu0
    %373 = vxpose.xlu0.b32.start [1/16] %v95, 128
    %374 = vxpose.xlu0.b32.cont [2/16] %v96, 128
    %375 = vxpose.xlu0.b32.cont [3/16] %v97, 128
    %376 = vxpose.xlu0.b32.cont [4/16] %v98, 128
    %377 = vxpose.xlu0.b32.cont [5/16] %v99, 128
    %378 = vxpose.xlu0.b32.cont [6/16] %v100, 128
    %379 = vxpose.xlu0.b32.cont [7/16] %v101, 128
    %380 = vxpose.xlu0.b32.cont [8/16] %v102, 128
    %381 = vxpose.xlu0.b32.cont [9/16] %v103, 128
    %382 = vxpose.xlu0.b32.cont [10/16] %v104, 128
    %383 = vxpose.xlu0.b32.cont [11/16] %v105, 128
    %384 = vxpose.xlu0.b32.cont [12/16] %v106, 128
    %385 = vxpose.xlu0.b32.cont [13/16] %v107, 128
    %386 = vxpose.xlu0.b32.cont [14/16] %v108, 128
    %387 = vxpose.xlu0.b32.cont [15/16] %v109, 128
    %388 = vxpose.xlu0.b32.end [16/16] %v110, 128
    %v389 = vpop.trf.xlu0
    %v390 = vpop.trf.xlu0
    %v391 = vpop.trf.xlu0
    %v392 = vpop.trf.xlu0
    %v393 = vpop.trf.xlu0
    %v394 = vpop.trf.xlu0
    %v395 = vpop.trf.xlu0
    %v396 = vpop.trf.xlu0
    %v397 = vpop.trf.xlu0
    %v398 = vpop.trf.xlu0
    %v399 = vpop.trf.xlu0
    %v400 = vpop.trf.xlu0
    %v401 = vpop.trf.xlu0
    %v402 = vpop.trf.xlu0
    %v403 = vpop.trf.xlu0
    %v404 = vpop.trf.xlu0
    %405 = vmatprep.subr.mxu0 %v112
    %406 = vmatpush1.xpose.msra.mxu0 %v111
    %407 = vmatprep.subr.mxu0 %v118
    %408 = vmatpush1.xpose.msra.mxu0 %v117
    %409 = vmatprep.subr.mxu0 %v124
    %410 = vmatpush1.xpose.msra.mxu0 %v123
    %411 = vmatprep.subr.mxu0 %v130
    %412 = vmatpush1.xpose.msra.mxu0 %v129
    %413 = vmatprep.subr.mxu0 %v136
    %414 = vmatpush1.xpose.msra.mxu0 %v135
    %415 = vmatprep.subr.mxu0 %v142
    %416 = vmatpush1.xpose.msra.mxu0 %v141
    %417 = vmatprep.subr.mxu0 %v148
    %418 = vmatpush1.xpose.msra.mxu0 %v147
    %419 = vmatprep.subr.mxu0 %v154
    %420 = vmatpush1.xpose.msra.mxu0 %v153
    %421 = vmatprep.subr.mxu0 %v160
    %422 = vmatpush1.xpose.msra.mxu0 %v159
    %423 = vmatprep.subr.mxu0 %v166
    %424 = vmatpush1.xpose.msra.mxu0 %v165
    %425 = vmatprep.subr.mxu0 %v172
    %426 = vmatpush1.xpose.msra.mxu0 %v171
    %427 = vmatprep.subr.mxu0 %v178
    %428 = vmatpush1.xpose.msra.mxu0 %v177
    %429 = vmatprep.subr.mxu0 %v184
    %430 = vmatpush1.xpose.msra.mxu0 %v183
    %431 = vmatprep.subr.mxu0 %v190
    %432 = vmatpush1.xpose.msra.mxu0 %v189
    %433 = vmatprep.subr.mxu0 %v196
    %434 = vmatpush1.xpose.msra.mxu0 %v195
    %435 = vmatprep.subr.mxu0 %v202
    %436 = vmatpush1.xpose.msra.mxu0 %v201
    %437 = vmatprep.subr.mxu0 0.0
    %438 = vmatpush1.xpose.msra.mxu0 0.0
    %439 = vmatprep.subr.mxu0 0.0
    %440 = vmatpush1.xpose.msra.mxu0 0.0
    %441 = vmatprep.subr.mxu0 0.0
    %442 = vmatpush1.xpose.msra.mxu0 0.0
    %443 = vmatprep.subr.mxu0 0.0
    %444 = vmatpush1.xpose.msra.mxu0 0.0
    %445 = vmatprep.subr.mxu0 0.0
    %446 = vmatpush1.xpose.msra.mxu0 0.0
    %447 = vmatprep.subr.mxu0 0.0
    %448 = vmatpush1.xpose.msra.mxu0 0.0
    %449 = vmatprep.subr.mxu0 0.0
    %450 = vmatpush1.xpose.msra.mxu0 0.0
    %451 = vmatprep.subr.mxu0 0.0
    %452 = vmatpush1.xpose.msra.mxu0 0.0
    %453 = vmatprep.subr.mxu0 0.0
    %454 = vmatpush1.xpose.msra.mxu0 0.0
    %455 = vmatprep.subr.mxu0 0.0
    %456 = vmatpush1.xpose.msra.mxu0 0.0
    %457 = vmatprep.subr.mxu0 0.0
    %458 = vmatpush1.xpose.msra.mxu0 0.0
    %459 = vmatprep.subr.mxu0 0.0
    %460 = vmatpush1.xpose.msra.mxu0 0.0
    %461 = vmatprep.subr.mxu0 0.0
    %462 = vmatpush1.xpose.msra.mxu0 0.0
    %463 = vmatprep.subr.mxu0 0.0
    %464 = vmatpush1.xpose.msra.mxu0 0.0
    %465 = vmatprep.subr.mxu0 0.0
    %466 = vmatpush1.xpose.msra.mxu0 0.0
    %467 = vmatprep.subr.mxu0 0.0
    %468 = vmatpush1.xpose.msra.mxu0 0.0
    %469 = vmatprep.mubr.f32.mxu0 %v261
    %470 = vmatmul.mubr.f32.gmra.mrb[0].mxu0 %v229
    %v471 = vpop.f32.mrb[0].mxu0
    %v472 = vadd.f32 %v211, %v471
    %v473 = vpop.f32.mrb[0].mxu0
    %474 = vdwg.mxu0
    %475 = vmatprep.subr.mxu0 %v114
    %476 = vmatpush1.xpose.msra.mxu0 %v113
    %477 = vmatprep.subr.mxu0 %v120
    %478 = vmatpush1.xpose.msra.mxu0 %v119
    %479 = vmatprep.subr.mxu0 %v126
    %480 = vmatpush1.xpose.msra.mxu0 %v125
    %481 = vmatprep.subr.mxu0 %v132
    %482 = vmatpush1.xpose.msra.mxu0 %v131
    %483 = vmatprep.subr.mxu0 %v138
    %484 = vmatpush1.xpose.msra.mxu0 %v137
    %485 = vmatprep.subr.mxu0 %v144
    %486 = vmatpush1.xpose.msra.mxu0 %v143
    %487 = vmatprep.subr.mxu0 %v150
    %488 = vmatpush1.xpose.msra.mxu0 %v149
    %489 = vmatprep.subr.mxu0 %v156
    %490 = vmatpush1.xpose.msra.mxu0 %v155
    %491 = vmatprep.subr.mxu0 %v162
    %492 = vmatpush1.xpose.msra.mxu0 %v161
    %493 = vmatprep.subr.mxu0 %v168
    %494 = vmatpush1.xpose.msra.mxu0 %v167
    %495 = vmatprep.subr.mxu0 %v174
    %496 = vmatpush1.xpose.msra.mxu0 %v173
    %497 = vmatprep.subr.mxu0 %v180
    %498 = vmatpush1.xpose.msra.mxu0 %v179
    %499 = vmatprep.subr.mxu0 %v186
    %500 = vmatpush1.xpose.msra.mxu0 %v185
    %501 = vmatprep.subr.mxu0 %v192
    %502 = vmatpush1.xpose.msra.mxu0 %v191
    %503 = vmatprep.subr.mxu0 %v198
    %504 = vmatpush1.xpose.msra.mxu0 %v197
    %505 = vmatprep.subr.mxu0 %v204
    %506 = vmatpush1.xpose.msra.mxu0 %v203
    %507 = vmatprep.subr.mxu0 0.0
    %508 = vmatpush1.xpose.msra.mxu0 0.0
    %509 = vmatprep.subr.mxu0 0.0
    %510 = vmatpush1.xpose.msra.mxu0 0.0
    %511 = vmatprep.subr.mxu0 0.0
    %512 = vmatpush1.xpose.msra.mxu0 0.0
    %513 = vmatprep.subr.mxu0 0.0
    %514 = vmatpush1.xpose.msra.mxu0 0.0
    %515 = vmatprep.subr.mxu0 0.0
    %516 = vmatpush1.xpose.msra.mxu0 0.0
    %517 = vmatprep.subr.mxu0 0.0
    %518 = vmatpush1.xpose.msra.mxu0 0.0
    %519 = vmatprep.subr.mxu0 0.0
    %520 = vmatpush1.xpose.msra.mxu0 0.0
    %521 = vmatprep.subr.mxu0 0.0
    %522 = vmatpush1.xpose.msra.mxu0 0.0
    %523 = vmatprep.subr.mxu0 0.0
    %524 = vmatpush1.xpose.msra.mxu0 0.0
    %525 = vmatprep.subr.mxu0 0.0
    %526 = vmatpush1.xpose.msra.mxu0 0.0
    %527 = vmatprep.subr.mxu0 0.0
    %528 = vmatpush1.xpose.msra.mxu0 0.0
    %529 = vmatprep.subr.mxu0 0.0
    %530 = vmatpush1.xpose.msra.mxu0 0.0
    %531 = vmatprep.subr.mxu0 0.0
    %532 = vmatpush1.xpose.msra.mxu0 0.0
    %533 = vmatprep.subr.mxu0 0.0
    %534 = vmatpush1.xpose.msra.mxu0 0.0
    %535 = vmatprep.subr.mxu0 0.0
    %536 = vmatpush1.xpose.msra.mxu0 0.0
    %537 = vmatprep.subr.mxu0 0.0
    %538 = vmatpush1.xpose.msra.mxu0 0.0
    %539 = vmatprep.mubr.f32.mxu0 %v325
    %540 = vmatmul.mubr.f32.gmra.mrb[0].mxu0 %v293
    %v541 = vpop.f32.mrb[0].mxu0
    %v542 = vadd.f32 %v472, %v541
    %v543 = vpop.f32.mrb[0].mxu0
    %544 = vdwg.mxu0
    %545 = vmatprep.subr.mxu0 %v116
    %546 = vmatpush1.xpose.msra.mxu0 %v115
    %547 = vmatprep.subr.mxu0 %v122
    %548 = vmatpush1.xpose.msra.mxu0 %v121
    %549 = vmatprep.subr.mxu0 %v128
    %550 = vmatpush1.xpose.msra.mxu0 %v127
    %551 = vmatprep.subr.mxu0 %v134
    %552 = vmatpush1.xpose.msra.mxu0 %v133
    %553 = vmatprep.subr.mxu0 %v140
    %554 = vmatpush1.xpose.msra.mxu0 %v139
    %555 = vmatprep.subr.mxu0 %v146
    %556 = vmatpush1.xpose.msra.mxu0 %v145
    %557 = vmatprep.subr.mxu0 %v152
    %558 = vmatpush1.xpose.msra.mxu0 %v151
    %559 = vmatprep.subr.mxu0 %v158
    %560 = vmatpush1.xpose.msra.mxu0 %v157
    %561 = vmatprep.subr.mxu0 %v164
    %562 = vmatpush1.xpose.msra.mxu0 %v163
    %563 = vmatprep.subr.mxu0 %v170
    %564 = vmatpush1.xpose.msra.mxu0 %v169
    %565 = vmatprep.subr.mxu0 %v176
    %566 = vmatpush1.xpose.msra.mxu0 %v175
    %567 = vmatprep.subr.mxu0 %v182
    %568 = vmatpush1.xpose.msra.mxu0 %v181
    %569 = vmatprep.subr.mxu0 %v188
    %570 = vmatpush1.xpose.msra.mxu0 %v187
    %571 = vmatprep.subr.mxu0 %v194
    %572 = vmatpush1.xpose.msra.mxu0 %v193
    %573 = vmatprep.subr.mxu0 %v200
    %574 = vmatpush1.xpose.msra.mxu0 %v199
    %575 = vmatprep.subr.mxu0 %v206
    %576 = vmatpush1.xpose.msra.mxu0 %v205
    %577 = vmatprep.subr.mxu0 0.0
    %578 = vmatpush1.xpose.msra.mxu0 0.0
    %579 = vmatprep.subr.mxu0 0.0
    %580 = vmatpush1.xpose.msra.mxu0 0.0
    %581 = vmatprep.subr.mxu0 0.0
    %582 = vmatpush1.xpose.msra.mxu0 0.0
    %583 = vmatprep.subr.mxu0 0.0
    %584 = vmatpush1.xpose.msra.mxu0 0.0
    %585 = vmatprep.subr.mxu0 0.0
    %586 = vmatpush1.xpose.msra.mxu0 0.0
    %587 = vmatprep.subr.mxu0 0.0
    %588 = vmatpush1.xpose.msra.mxu0 0.0
    %589 = vmatprep.subr.mxu0 0.0
    %590 = vmatpush1.xpose.msra.mxu0 0.0
    %591 = vmatprep.subr.mxu0 0.0
    %592 = vmatpush1.xpose.msra.mxu0 0.0
    %593 = vmatprep.subr.mxu0 0.0
    %594 = vmatpush1.xpose.msra.mxu0 0.0
    %595 = vmatprep.subr.mxu0 0.0
    %596 = vmatpush1.xpose.msra.mxu0 0.0
    %597 = vmatprep.subr.mxu0 0.0
    %598 = vmatpush1.xpose.msra.mxu0 0.0
    %599 = vmatprep.subr.mxu0 0.0
    %600 = vmatpush1.xpose.msra.mxu0 0.0
    %601 = vmatprep.subr.mxu0 0.0
    %602 = vmatpush1.xpose.msra.mxu0 0.0
    %603 = vmatprep.subr.mxu0 0.0
    %604 = vmatpush1.xpose.msra.mxu0 0.0
    %605 = vmatprep.subr.mxu0 0.0
    %606 = vmatpush1.xpose.msra.mxu0 0.0
    %607 = vmatprep.subr.mxu0 0.0
    %608 = vmatpush1.xpose.msra.mxu0 0.0
    %609 = vmatprep.mubr.f32.mxu0 %v389
    %610 = vmatmul.mubr.f32.gmra.mrb[0].mxu0 %v357
    %v611 = vpop.f32.mrb[0].mxu0
    %v612 = vadd.f32 %v542, %v611
    %v613 = vpop.f32.mrb[0].mxu0
    %614 = vdwg.mxu0
    %615 = vst [vmem:[#allocation2] sm:$0x3] %v612
    // Predicated region
    $region14: #{tpu_custom_call.1} parent=1 // pred_check
      _
    $region15: #{tpu_custom_call.1} parent=1 // pred_check_branch
      %617 = sbr.rel (0) target = $region17
    $region16: #{tpu_custom_call.1} parent=1 // pred_region
      %s619 = ssub.s32 32, 32
      %620 = vsyncadd [#allocation3], %s619
      %s622 = sshll.u32 [#allocation2], 4
      %s623 = int_to_ptr.vmem [resolvable:$true] %s622
      %625 = dma.vmem_to_hbm [thread:$0]  %s623, 32, %s3, [#allocation3]
    $region17: #{tpu_custom_call.1} parent=1 // pred_fallthru
      _
    // Predicated region
    $region18: #{tpu_custom_call.1} parent=1 // pred_check
      _
    $region19: #{tpu_custom_call.1} parent=1 // pred_check_branch
      %627 = sbr.rel (0) target = $region21
    $region20: #{tpu_custom_call.1} parent=1 // pred_region
      %628 = dma.done [#allocation3], 32
    $region21: #{tpu_custom_call.1} parent=1 // pred_fallthru
      _
    %629 = vsyncpa [#allocation3], 1

</llo_original>
